<compile_context>
chip_gen: v5e
topology: v5e:2x2
jax: 0.10.0
libtpu: 0.0.40
codegen_flags: <defaults>
</compile_context>

<pallas_src>
import jax
import jax.numpy as jnp
from jax.experimental import pallas as pl
from jax.experimental.pallas import tpu as pltpu


# ----------------------------------------------------------------------------
# Static plan (mirrors the nn.Module constructor)
# ----------------------------------------------------------------------------
def make_plan(conv_config, hidden_layers, pool_every, input_length,
              input_channels, out_features):
    convs = []
    in_c, L = input_channels, input_length
    for i, (out_c, k) in enumerate(conv_config):
        # TODO(synk): even conv kernel sizes (PyTorch padding=k//2 then yields
        # L+1 output positions) are not supported; only odd k is implemented.
        assert k % 2 == 1, "only odd conv kernel sizes are supported"
        convs.append(dict(k=k, pad=k // 2, in_c=in_c, out_c=out_c, L=L,
                          pool_after=((i + 1) % pool_every == 0)))
        if (i + 1) % pool_every == 0:
            L = L // 2
        in_c = out_c
    ffn_dims = list(hidden_layers) + [out_features]
    return dict(convs=convs, flatten_L=L, flatten_C=in_c,
                flatten_dim=L * in_c, ffn_dims=ffn_dims)


# ----------------------------------------------------------------------------
# Fused kernel (built per static plan; variable number of refs)
# ----------------------------------------------------------------------------
def _make_kernel(plan, tile_b, n_inputs):
    convs = plan["convs"]
    n_conv = len(convs)
    flatten_L = plan["flatten_L"]
    flatten_C = plan["flatten_C"]
    ffn_dims = plan["ffn_dims"]
    n_ffn = len(ffn_dims)

    def kernel(*refs):
        in_refs = refs[:n_inputs]
        o_ref = refs[n_inputs]
        scratch = refs[n_inputs + 1:]

        x_ref = in_refs[0]
        conv_refs = in_refs[1:1 + 2 * n_conv]
        ffn_refs = in_refs[1 + 2 * n_conv:]

        # Scratch layout (same order as built in build_forward):
        #   per conv: pad buf, im2col buf, (pool buf if pool_after) ; then flat buf.
        si = 0
        cur3 = None  # fp32 (TILE_B, L, C) activation, channel-last

        # ---- conv stack: one fused im2col contraction per layer ----
        for i, cv in enumerate(convs):
            L, K, pad = cv["L"], cv["k"], cv["pad"]
            in_c, out_c = cv["in_c"], cv["out_c"]
            w_ref = conv_refs[2 * i]        # (K*Cin, Cout) bf16
            b_ref = conv_refs[2 * i + 1]    # (1, Cout)     fp32

            xp = scratch[si]; si += 1       # (TILE_B, L + 2*pad, Cin) bf16
            ic = scratch[si]; si += 1       # (TILE_B, L, K*Cin)       bf16

            # Zero only the halo rows (cheap), then write the activation.
            if pad > 0:
                zeros = jnp.zeros((tile_b, pad, in_c), xp.dtype)
                xp[:, 0:pad, :] = zeros
                xp[:, pad + L:pad + L + pad, :] = zeros
            src = x_ref[...] if i == 0 else cur3
            xp[:, pad:pad + L, :] = src.astype(xp.dtype)

            # im2col: K tap-shifted windows concatenated along lanes.
            for t in range(K):
                ic[:, :, t * in_c:(t + 1) * in_c] = xp[:, t:t + L, :]

            patch = ic[...].reshape(tile_b * L, K * in_c)        # leading merge
            acc = jnp.dot(patch, w_ref[...],
                          preferred_element_type=jnp.float32)    # (TILE_B*L, Cout)
            act = jnp.maximum(acc + b_ref[...], 0.0)
            cur3 = act.reshape(tile_b, L, out_c)                 # leading split

            # MaxPool1d(2): stride-2 sublane reads + VPU max (fp32).
            if cv["pool_after"]:
                Lh = L // 2
                ps = scratch[si]; si += 1   # (TILE_B, L, Cout) fp32
                ps[...] = cur3
                even = ps[:, pl.ds(0, Lh, stride=2), :]
                odd = ps[:, pl.ds(1, Lh, stride=2), :]
                cur3 = jnp.maximum(even, odd)                    # (TILE_B, Lh, Cout)

        if n_conv == 0:
            cur3 = x_ref[...]

        # ---- flatten into a lane-major (TILE_B, flatten_dim) bf16 tile ----
        # (PyTorch's channel-major flatten order is folded into the first FFN
        #  weight in prep_params, so position-major packing here is fine.)
        flat_scr = scratch[si]; si += 1     # (TILE_B, flatten_L*flatten_C) bf16
        for lp in range(flatten_L):
            flat_scr[:, lp * flatten_C:(lp + 1) * flatten_C] = (
                cur3[:, lp, :].astype(flat_scr.dtype))
        h = flat_scr[...]                   # (TILE_B, flatten_dim) bf16

        # ---- FFN: (TILE_B, prev) @ (prev, d) MXU matmuls, fp32 accumulate ----
        # nn.Dropout: identity in eval mode.
        # TODO(synk): training-mode dropout (random masking) is not implemented.
        out = None
        for j in range(n_ffn):
            wj_ref, bj_ref = ffn_refs[2 * j], ffn_refs[2 * j + 1]
            out = jnp.dot(h, wj_ref[...],
                          preferred_element_type=jnp.float32) + bj_ref[...]
            if j < n_ffn - 1:
                out = jnp.maximum(out, 0.0)
                h = out.astype(jnp.bfloat16)

        o_ref[...] = out.astype(o_ref.dtype)   # lane-dense (TILE_B, F_pad) store

    return kernel


def build_forward(plan, *, max_tile_b=128):
    """max_tile_b: batch rows stacked into the matmul M dim per grid step.
    128 is a safe default for v5e; v6e/v7x can go higher (VMEM permitting).
    On v7x (2 TensorCores) prefer a tile that yields a grid of >= 2 steps."""
    convs, ffn_dims = plan["convs"], plan["ffn_dims"]
    flatten_L, flatten_C = plan["flatten_L"], plan["flatten_C"]

    def forward(x, kparams):
        B, L0, C0 = x.shape
        F = ffn_dims[-1]
        F_pad = kparams["ffn"][-1][0].shape[1]   # lane-padded logits width

        # Batch tiling (TILE_B is a multiple of 8 whenever it blocks B).
        tile_b = B if B <= max_tile_b else max_tile_b
        n_tiles = pl.cdiv(B, tile_b)
        B_pad = n_tiles * tile_b
        if B_pad != B:
            x = jnp.pad(x, ((0, B_pad - B), (0, 0), (0, 0)))

        inputs = [x]
        in_specs = [pl.BlockSpec((tile_b, L0, C0), lambda b: (b, 0, 0))]
        for w, bb in kparams["conv"] + kparams["ffn"]:
            inputs += [w, bb]
            in_specs += [pl.BlockSpec(w.shape, lambda b: (0, 0)),
                         pl.BlockSpec(bb.shape, lambda b: (0, 0))]
            # NOTE: for large configs on v7x, mark these grid-invariant weight
            # specs pipeline_mode=pl.Buffered(1) to avoid double-buffering.

        scratch_shapes = []
        for cv in convs:
            L, k, pad = cv["L"], cv["k"], cv["pad"]
            in_c, out_c = cv["in_c"], cv["out_c"]
            scratch_shapes.append(pltpu.VMEM((tile_b, L + 2 * pad, in_c),
                                             jnp.bfloat16))
            scratch_shapes.append(pltpu.VMEM((tile_b, L, k * in_c),
                                             jnp.bfloat16))
            if cv["pool_after"]:
                scratch_shapes.append(pltpu.VMEM((tile_b, L, out_c),
                                                 jnp.float32))
        scratch_shapes.append(pltpu.VMEM((tile_b, flatten_L * flatten_C),
                                         jnp.bfloat16))

        out = pl.pallas_call(
            _make_kernel(plan, tile_b, len(inputs)),
            out_shape=jax.ShapeDtypeStruct((B_pad, F_pad), jnp.float32),
            grid_spec=pltpu.PrefetchScalarGridSpec(
                num_scalar_prefetch=0,
                grid=(n_tiles,),
                in_specs=in_specs,
                out_specs=pl.BlockSpec((tile_b, F_pad), lambda b: (b, 0)),
                scratch_shapes=scratch_shapes),
            compiler_params=pltpu.CompilerParams(
                dimension_semantics=("parallel",),
                vmem_limit_bytes=32 * 1024 * 1024),
        )(*inputs)
        return out[:B, :F]

    return forward


# ----------------------------------------------------------------------------
# Parameters: synthetic PyTorch-shaped params + one-time kernel-layout prep
# ----------------------------------------------------------------------------
def init_params(key, conv_config, hidden_layers, input_channels, out_features,
                flatten_dim):
    params = {"conv": [], "ffn": []}
    in_c = input_channels
    for out_c, k in conv_config:
        key, k1, k2 = jax.random.split(key, 3)
        params["conv"].append(
            (jax.random.normal(k1, (out_c, in_c, k), jnp.float32) * 0.1,   # Conv1d.weight
             jax.random.normal(k2, (out_c,), jnp.float32) * 0.1))          # Conv1d.bias
        in_c = out_c
    prev = flatten_dim
    for d in list(hidden_layers) + [out_features]:
        key, k1, k2 = jax.random.split(key, 3)
        params["ffn"].append(
            (jax.random.normal(k1, (d, prev), jnp.float32) * 0.1,          # Linear.weight (out,in)
             jax.random.normal(k2, (d,), jnp.float32) * 0.1))              # Linear.bias
        prev = d
    return params


def prep_params(params, plan, out_pad_to=128):
    """Fold all layout work (conv weight im2col packing, Linear transposes,
    flatten permutation, logits lane padding, bf16 casts) into the parameters
    once, outside the hot path."""
    flatten_L, flatten_C = plan["flatten_L"], plan["flatten_C"]
    F = plan["ffn_dims"][-1]
    F_pad = ((F + out_pad_to - 1) // out_pad_to) * out_pad_to
    kp = {"conv": [], "ffn": []}
    for w, b in params["conv"]:
        out_c, in_c, k = w.shape
        # (O, Cin, K) -> (K, Cin, O) -> (K*Cin, O): rows ordered [t*Cin + ci].
        wk = jnp.transpose(w, (2, 1, 0)).reshape(k * in_c, out_c)
        kp["conv"].append((wk.astype(jnp.bfloat16),
                           b.reshape(1, -1).astype(jnp.float32)))
    n_ffn = len(params["ffn"])
    for j, (w, b) in enumerate(params["ffn"]):
        d = w.shape[0]
        wt = w.T                                   # (prev, d)
        if j == 0:
            # PyTorch flatten is channel-major (f = c*flatten_L + l); the
            # kernel packs position-major (lp*C + c) -> permute rows to match.
            wt = wt.reshape(flatten_C, flatten_L, d).transpose(1, 0, 2)
            wt = wt.reshape(flatten_L * flatten_C, d)
        if j == n_ffn - 1 and F_pad != d:
            wt = jnp.pad(wt, ((0, 0), (0, F_pad - d)))
            b = jnp.pad(b, (0, F_pad - d))
        kp["ffn"].append((wt.astype(jnp.bfloat16),
                          b.reshape(1, -1).astype(jnp.float32)))
    return kp


# ----------------------------------------------------------------------------
# Pure-JAX reference of the PyTorch forward (eval mode), for validation
# ----------------------------------------------------------------------------
def reference_forward(params, x, pool_every):
    h = jnp.transpose(x, (0, 2, 1))                      # (B, C, L)
    for i, (w, b) in enumerate(params["conv"]):
        pad = w.shape[2] // 2
        h = jax.lax.conv_general_dilated(
            h, w, window_strides=(1,), padding=[(pad, pad)],
            dimension_numbers=("NCH", "OIH", "NCH"))
        h = jnp.maximum(h + b[None, :, None], 0.0)
        if (i + 1) % pool_every == 0:
            Lh = h.shape[2] // 2
            h = jnp.maximum(h[:, :, 0:2 * Lh:2], h[:, :, 1:2 * Lh:2])
    h = h.reshape(h.shape[0], -1)
    n = len(params["ffn"])
    for j, (w, b) in enumerate(params["ffn"]):
        h = h @ w.T + b
        if j < n - 1:
            h = jnp.maximum(h, 0.0)
    return h


# ----------------------------------------------------------------------------
# Demo / self-check
# ----------------------------------------------------------------------------
def run_case(name, key, conv_config, hidden_layers, input_length,
             input_channels, out_features, pool_every, batch):
    plan = make_plan(conv_config, hidden_layers, pool_every, input_length,
                     input_channels, out_features)
    pkey, xkey = jax.random.split(key)
    params = init_params(pkey, conv_config, hidden_layers, input_channels,
                         out_features, plan["flatten_dim"])
    kparams = prep_params(params, plan)
    x = jax.random.normal(xkey, (batch, input_length, input_channels),
                          jnp.float32)

    forward = jax.jit(build_forward(plan))
    out = jax.block_until_ready(forward(x, kparams))
    assert out.shape == (batch, out_features), (name, out.shape)

    ref = reference_forward(params, x, pool_every)
    err = float(jnp.max(jnp.abs(out - ref)))
    assert err < 5e-2, (name, err)
    return err


if __name__ == "__main__":
    key = jax.random.PRNGKey(0)
    k1, k2 = jax.random.split(key)

    # Main config (matches the module defaults at small shapes).
    run_case("base", k1,
             conv_config=[(8, 3), (8, 3)], hidden_layers=[32],
             input_length=16, input_channels=4, out_features=10,
             pool_every=2, batch=2)

    # Second config: K=5 conv, intermediate pool, no pool after last conv,
    # two hidden layers — exercises the general code paths.
    run_case("multi", k2,
             conv_config=[(8, 3), (16, 5), (16, 3)], hidden_layers=[32, 16],
             input_length=32, input_channels=4, out_features=10,
             pool_every=2, batch=4)

    print("KERNEL_OK")
</pallas_src>

<mosaic_0001>
module attributes {stable_mosaic.version = 11 : i64} {
  func.func @kernel(%arg0: i32, %arg1: memref<2x16x4xf32, #tpu.memory_space<vmem>>, %arg2: memref<12x8xbf16, #tpu.memory_space<vmem>>, %arg3: memref<1x8xf32, #tpu.memory_space<vmem>>, %arg4: memref<24x8xbf16, #tpu.memory_space<vmem>>, %arg5: memref<1x8xf32, #tpu.memory_space<vmem>>, %arg6: memref<64x32xbf16, #tpu.memory_space<vmem>>, %arg7: memref<1x32xf32, #tpu.memory_space<vmem>>, %arg8: memref<32x128xbf16, #tpu.memory_space<vmem>>, %arg9: memref<1x128xf32, #tpu.memory_space<vmem>>, %arg10: memref<2x128xf32, #tpu.memory_space<vmem>>, %arg11: memref<2x18x4xbf16, #tpu.memory_space<vmem>>, %arg12: memref<2x16x12xbf16, #tpu.memory_space<vmem>>, %arg13: memref<2x18x8xbf16, #tpu.memory_space<vmem>>, %arg14: memref<2x16x24xbf16, #tpu.memory_space<vmem>>, %arg15: memref<2x16x8xf32, #tpu.memory_space<vmem>>, %arg16: memref<2x64xbf16, #tpu.memory_space<vmem>>) attributes {dimension_semantics = [#tpu.dimension_semantics<parallel>], iteration_bounds = array<i64: 1>, scalar_prefetch = 0 : i64, scratch_operands = 6 : i64, tpu.core_type = #tpu.core_type<tc>, window_params = [{transform_indices = @transform_0, window_bounds = array<i64: 2, 16, 4>}, {pipeline_mode = #tpu.pipeline_mode<synchronous>, transform_indices = @transform_1, window_bounds = array<i64: 12, 8>}, {pipeline_mode = #tpu.pipeline_mode<synchronous>, transform_indices = @transform_2, window_bounds = array<i64: 1, 8>}, {pipeline_mode = #tpu.pipeline_mode<synchronous>, transform_indices = @transform_3, window_bounds = array<i64: 24, 8>}, {pipeline_mode = #tpu.pipeline_mode<synchronous>, transform_indices = @transform_4, window_bounds = array<i64: 1, 8>}, {pipeline_mode = #tpu.pipeline_mode<synchronous>, transform_indices = @transform_5, window_bounds = array<i64: 64, 32>}, {pipeline_mode = #tpu.pipeline_mode<synchronous>, transform_indices = @transform_6, window_bounds = array<i64: 1, 32>}, {pipeline_mode = #tpu.pipeline_mode<synchronous>, transform_indices = @transform_7, window_bounds = array<i64: 32, 128>}, {pipeline_mode = #tpu.pipeline_mode<synchronous>, transform_indices = @transform_8, window_bounds = array<i64: 1, 128>}, {transform_indices = @transform_9, window_bounds = array<i64: 2, 128>}]} {
    %cst = arith.constant 0.000000e+00 : bf16
    %0 = vector.broadcast %cst : bf16 to vector<2x1x4xbf16>
    %c0 = arith.constant 0 : index
    %c0_0 = arith.constant 0 : index
    %c0_1 = arith.constant 0 : index
    %1 = vector.load %arg11[%c0, %c0_0, %c0_1] : memref<2x18x4xbf16, #tpu.memory_space<vmem>>, vector<2x1x4xbf16>
    tpu.vector_store %arg11[%c0, %c0_0, %c0_1], %0 {strides = array<i32>} : memref<2x18x4xbf16, #tpu.memory_space<vmem>>, vector<2x1x4xbf16>,
    %c0_2 = arith.constant 0 : index
    %c17 = arith.constant 17 : index
    %c0_3 = arith.constant 0 : index
    %2 = vector.load %arg11[%c0_2, %c17, %c0_3] : memref<2x18x4xbf16, #tpu.memory_space<vmem>>, vector<2x1x4xbf16>
    tpu.vector_store %arg11[%c0_2, %c17, %c0_3], %0 {strides = array<i32>} : memref<2x18x4xbf16, #tpu.memory_space<vmem>>, vector<2x1x4xbf16>,
    %c0_4 = arith.constant 0 : index
    %c0_5 = arith.constant 0 : index
    %c0_6 = arith.constant 0 : index
    %3 = vector.load %arg1[%c0_4, %c0_5, %c0_6] : memref<2x16x4xf32, #tpu.memory_space<vmem>>, vector<2x16x4xf32>
    %4 = arith.truncf %3 : vector<2x16x4xf32> to vector<2x16x4xbf16>
    %c0_7 = arith.constant 0 : index
    %c1 = arith.constant 1 : index
    %c0_8 = arith.constant 0 : index
    %5 = vector.load %arg11[%c0_7, %c1, %c0_8] : memref<2x18x4xbf16, #tpu.memory_space<vmem>>, vector<2x16x4xbf16>
    tpu.vector_store %arg11[%c0_7, %c1, %c0_8], %4 {strides = array<i32>} : memref<2x18x4xbf16, #tpu.memory_space<vmem>>, vector<2x16x4xbf16>,
    %c0_9 = arith.constant 0 : index
    %c0_10 = arith.constant 0 : index
    %c0_11 = arith.constant 0 : index
    %6 = vector.load %arg11[%c0_9, %c0_10, %c0_11] : memref<2x18x4xbf16, #tpu.memory_space<vmem>>, vector<2x16x4xbf16>
    %c0_12 = arith.constant 0 : index
    %c0_13 = arith.constant 0 : index
    %c0_14 = arith.constant 0 : index
    %7 = vector.load %arg12[%c0_12, %c0_13, %c0_14] : memref<2x16x12xbf16, #tpu.memory_space<vmem>>, vector<2x16x4xbf16>
    tpu.vector_store %arg12[%c0_12, %c0_13, %c0_14], %6 {strides = array<i32>} : memref<2x16x12xbf16, #tpu.memory_space<vmem>>, vector<2x16x4xbf16>,
    %c0_15 = arith.constant 0 : index
    %c1_16 = arith.constant 1 : index
    %c0_17 = arith.constant 0 : index
    %8 = vector.load %arg11[%c0_15, %c1_16, %c0_17] : memref<2x18x4xbf16, #tpu.memory_space<vmem>>, vector<2x16x4xbf16>
    %c0_18 = arith.constant 0 : index
    %c0_19 = arith.constant 0 : index
    %c4 = arith.constant 4 : index
    %9 = vector.load %arg12[%c0_18, %c0_19, %c4] : memref<2x16x12xbf16, #tpu.memory_space<vmem>>, vector<2x16x4xbf16>
    tpu.vector_store %arg12[%c0_18, %c0_19, %c4], %8 {strides = array<i32>} : memref<2x16x12xbf16, #tpu.memory_space<vmem>>, vector<2x16x4xbf16>,
    %c0_20 = arith.constant 0 : index
    %c2 = arith.constant 2 : index
    %c0_21 = arith.constant 0 : index
    %10 = vector.load %arg11[%c0_20, %c2, %c0_21] : memref<2x18x4xbf16, #tpu.memory_space<vmem>>, vector<2x16x4xbf16>
    %c0_22 = arith.constant 0 : index
    %c0_23 = arith.constant 0 : index
    %c8 = arith.constant 8 : index
    %11 = vector.load %arg12[%c0_22, %c0_23, %c8] : memref<2x16x12xbf16, #tpu.memory_space<vmem>>, vector<2x16x4xbf16>
    tpu.vector_store %arg12[%c0_22, %c0_23, %c8], %10 {strides = array<i32>} : memref<2x16x12xbf16, #tpu.memory_space<vmem>>, vector<2x16x4xbf16>,
    %c0_24 = arith.constant 0 : index
    %c0_25 = arith.constant 0 : index
    %c0_26 = arith.constant 0 : index
    %12 = vector.load %arg12[%c0_24, %c0_25, %c0_26] : memref<2x16x12xbf16, #tpu.memory_space<vmem>>, vector<2x16x12xbf16>
    %13 = vector.shape_cast %12 : vector<2x16x12xbf16> to vector<32x12xbf16>
    %c0_27 = arith.constant 0 : index
    %c0_28 = arith.constant 0 : index
    %14 = vector.load %arg2[%c0_27, %c0_28] : memref<12x8xbf16, #tpu.memory_space<vmem>>, vector<12x8xbf16>
    %cst_29 = arith.constant dense<0.000000e+00> : vector<32x8xf32>
    %15 = tpu.matmul %13, %14, %cst_29 {dimension_numbers = #tpu.dot_dimension_numbers<[1], [0], [0], [1], [0, 0, 1, 1], [], []>} : vector<32x12xbf16>, vector<12x8xbf16>, vector<32x8xf32> -> vector<32x8xf32>
    %c0_30 = arith.constant 0 : index
    %c0_31 = arith.constant 0 : index
    %16 = vector.load %arg3[%c0_30, %c0_31] : memref<1x8xf32, #tpu.memory_space<vmem>>, vector<1x8xf32>
    %17 = vector.broadcast %16 : vector<1x8xf32> to vector<32x8xf32>
    %18 = arith.addf %15, %17 : vector<32x8xf32>
    %cst_32 = arith.constant 0.000000e+00 : f32
    %19 = vector.broadcast %cst_32 : f32 to vector<32x8xf32>
    %20 = arith.maximumf %18, %19 : vector<32x8xf32>
    %21 = vector.shape_cast %20 : vector<32x8xf32> to vector<2x16x8xf32>
    %cst_33 = arith.constant 0.000000e+00 : bf16
    %22 = vector.broadcast %cst_33 : bf16 to vector<2x1x8xbf16>
    %c0_34 = arith.constant 0 : index
    %c0_35 = arith.constant 0 : index
    %c0_36 = arith.constant 0 : index
    %23 = vector.load %arg13[%c0_34, %c0_35, %c0_36] : memref<2x18x8xbf16, #tpu.memory_space<vmem>>, vector<2x1x8xbf16>
    tpu.vector_store %arg13[%c0_34, %c0_35, %c0_36], %22 {strides = array<i32>} : memref<2x18x8xbf16, #tpu.memory_space<vmem>>, vector<2x1x8xbf16>,
    %c0_37 = arith.constant 0 : index
    %c17_38 = arith.constant 17 : index
    %c0_39 = arith.constant 0 : index
    %24 = vector.load %arg13[%c0_37, %c17_38, %c0_39] : memref<2x18x8xbf16, #tpu.memory_space<vmem>>, vector<2x1x8xbf16>
    tpu.vector_store %arg13[%c0_37, %c17_38, %c0_39], %22 {strides = array<i32>} : memref<2x18x8xbf16, #tpu.memory_space<vmem>>, vector<2x1x8xbf16>,
    %25 = arith.truncf %21 : vector<2x16x8xf32> to vector<2x16x8xbf16>
    %c0_40 = arith.constant 0 : index
    %c1_41 = arith.constant 1 : index
    %c0_42 = arith.constant 0 : index
    %26 = vector.load %arg13[%c0_40, %c1_41, %c0_42] : memref<2x18x8xbf16, #tpu.memory_space<vmem>>, vector<2x16x8xbf16>
    tpu.vector_store %arg13[%c0_40, %c1_41, %c0_42], %25 {strides = array<i32>} : memref<2x18x8xbf16, #tpu.memory_space<vmem>>, vector<2x16x8xbf16>,
    %c0_43 = arith.constant 0 : index
    %c0_44 = arith.constant 0 : index
    %c0_45 = arith.constant 0 : index
    %27 = vector.load %arg13[%c0_43, %c0_44, %c0_45] : memref<2x18x8xbf16, #tpu.memory_space<vmem>>, vector<2x16x8xbf16>
    %c0_46 = arith.constant 0 : index
    %c0_47 = arith.constant 0 : index
    %c0_48 = arith.constant 0 : index
    %28 = vector.load %arg14[%c0_46, %c0_47, %c0_48] : memref<2x16x24xbf16, #tpu.memory_space<vmem>>, vector<2x16x8xbf16>
    tpu.vector_store %arg14[%c0_46, %c0_47, %c0_48], %27 {strides = array<i32>} : memref<2x16x24xbf16, #tpu.memory_space<vmem>>, vector<2x16x8xbf16>,
    %c0_49 = arith.constant 0 : index
    %c1_50 = arith.constant 1 : index
    %c0_51 = arith.constant 0 : index
    %29 = vector.load %arg13[%c0_49, %c1_50, %c0_51] : memref<2x18x8xbf16, #tpu.memory_space<vmem>>, vector<2x16x8xbf16>
    %c0_52 = arith.constant 0 : index
    %c0_53 = arith.constant 0 : index
    %c8_54 = arith.constant 8 : index
    %30 = vector.load %arg14[%c0_52, %c0_53, %c8_54] : memref<2x16x24xbf16, #tpu.memory_space<vmem>>, vector<2x16x8xbf16>
    tpu.vector_store %arg14[%c0_52, %c0_53, %c8_54], %29 {strides = array<i32>} : memref<2x16x24xbf16, #tpu.memory_space<vmem>>, vector<2x16x8xbf16>,
    %c0_55 = arith.constant 0 : index
    %c2_56 = arith.constant 2 : index
    %c0_57 = arith.constant 0 : index
    %31 = vector.load %arg13[%c0_55, %c2_56, %c0_57] : memref<2x18x8xbf16, #tpu.memory_space<vmem>>, vector<2x16x8xbf16>
    %c0_58 = arith.constant 0 : index
    %c0_59 = arith.constant 0 : index
    %c16 = arith.constant 16 : index
    %32 = vector.load %arg14[%c0_58, %c0_59, %c16] : memref<2x16x24xbf16, #tpu.memory_space<vmem>>, vector<2x16x8xbf16>
    tpu.vector_store %arg14[%c0_58, %c0_59, %c16], %31 {strides = array<i32>} : memref<2x16x24xbf16, #tpu.memory_space<vmem>>, vector<2x16x8xbf16>,
    %c0_60 = arith.constant 0 : index
    %c0_61 = arith.constant 0 : index
    %c0_62 = arith.constant 0 : index
    %33 = vector.load %arg14[%c0_60, %c0_61, %c0_62] : memref<2x16x24xbf16, #tpu.memory_space<vmem>>, vector<2x16x24xbf16>
    %34 = vector.shape_cast %33 : vector<2x16x24xbf16> to vector<32x24xbf16>
    %c0_63 = arith.constant 0 : index
    %c0_64 = arith.constant 0 : index
    %35 = vector.load %arg4[%c0_63, %c0_64] : memref<24x8xbf16, #tpu.memory_space<vmem>>, vector<24x8xbf16>
    %cst_65 = arith.constant dense<0.000000e+00> : vector<32x8xf32>
    %36 = tpu.matmul %34, %35, %cst_65 {dimension_numbers = #tpu.dot_dimension_numbers<[1], [0], [0], [1], [0, 0, 1, 1], [], []>} : vector<32x24xbf16>, vector<24x8xbf16>, vector<32x8xf32> -> vector<32x8xf32>
    %c0_66 = arith.constant 0 : index
    %c0_67 = arith.constant 0 : index
    %37 = vector.load %arg5[%c0_66, %c0_67] : memref<1x8xf32, #tpu.memory_space<vmem>>, vector<1x8xf32>
    %38 = vector.broadcast %37 : vector<1x8xf32> to vector<32x8xf32>
    %39 = arith.addf %36, %38 : vector<32x8xf32>
    %cst_68 = arith.constant 0.000000e+00 : f32
    %40 = vector.broadcast %cst_68 : f32 to vector<32x8xf32>
    %41 = arith.maximumf %39, %40 : vector<32x8xf32>
    %42 = vector.shape_cast %41 : vector<32x8xf32> to vector<2x16x8xf32>
    %c0_69 = arith.constant 0 : index
    %c0_70 = arith.constant 0 : index
    %c0_71 = arith.constant 0 : index
    %43 = vector.load %arg15[%c0_69, %c0_70, %c0_71] : memref<2x16x8xf32, #tpu.memory_space<vmem>>, vector<2x16x8xf32>
    tpu.vector_store %arg15[%c0_69, %c0_70, %c0_71], %42 {strides = array<i32>} : memref<2x16x8xf32, #tpu.memory_space<vmem>>, vector<2x16x8xf32>,
    %c0_72 = arith.constant 0 : index
    %c0_73 = arith.constant 0 : index
    %c0_74 = arith.constant 0 : index
    %44 = tpu.strided_load %arg15[%c0_72, %c0_73, %c0_74] {strides = array<i32: 1, 2, 1>} : memref<2x16x8xf32, #tpu.memory_space<vmem>>, vector<2x8x8xf32>
    %c0_75 = arith.constant 0 : index
    %c1_76 = arith.constant 1 : index
    %c0_77 = arith.constant 0 : index
    %45 = tpu.strided_load %arg15[%c0_75, %c1_76, %c0_77] {strides = array<i32: 1, 2, 1>} : memref<2x16x8xf32, #tpu.memory_space<vmem>>, vector<2x8x8xf32>
    %46 = arith.maximumf %44, %45 : vector<2x8x8xf32>
    %47 = vector.extract_strided_slice %46 {offsets = [0, 0, 0], sizes = [2, 1, 8], strides = [1, 1, 1]} : vector<2x8x8xf32> to vector<2x1x8xf32>
    %48 = vector.shape_cast %47 : vector<2x1x8xf32> to vector<2x8xf32>
    %49 = arith.truncf %48 : vector<2x8xf32> to vector<2x8xbf16>
    %c0_78 = arith.constant 0 : index
    %c0_79 = arith.constant 0 : index
    %50 = vector.load %arg16[%c0_78, %c0_79] : memref<2x64xbf16, #tpu.memory_space<vmem>>, vector<2x8xbf16>
    tpu.vector_store %arg16[%c0_78, %c0_79], %49 {strides = array<i32>} : memref<2x64xbf16, #tpu.memory_space<vmem>>, vector<2x8xbf16>,
    %51 = vector.extract_strided_slice %46 {offsets = [0, 1, 0], sizes = [2, 1, 8], strides = [1, 1, 1]} : vector<2x8x8xf32> to vector<2x1x8xf32>
    %52 = vector.shape_cast %51 : vector<2x1x8xf32> to vector<2x8xf32>
    %53 = arith.truncf %52 : vector<2x8xf32> to vector<2x8xbf16>
    %c0_80 = arith.constant 0 : index
    %c8_81 = arith.constant 8 : index
    %54 = vector.load %arg16[%c0_80, %c8_81] : memref<2x64xbf16, #tpu.memory_space<vmem>>, vector<2x8xbf16>
    tpu.vector_store %arg16[%c0_80, %c8_81], %53 {strides = array<i32>} : memref<2x64xbf16, #tpu.memory_space<vmem>>, vector<2x8xbf16>,
    %55 = vector.extract_strided_slice %46 {offsets = [0, 2, 0], sizes = [2, 1, 8], strides = [1, 1, 1]} : vector<2x8x8xf32> to vector<2x1x8xf32>
    %56 = vector.shape_cast %55 : vector<2x1x8xf32> to vector<2x8xf32>
    %57 = arith.truncf %56 : vector<2x8xf32> to vector<2x8xbf16>
    %c0_82 = arith.constant 0 : index
    %c16_83 = arith.constant 16 : index
    %58 = vector.load %arg16[%c0_82, %c16_83] : memref<2x64xbf16, #tpu.memory_space<vmem>>, vector<2x8xbf16>
    tpu.vector_store %arg16[%c0_82, %c16_83], %57 {strides = array<i32>} : memref<2x64xbf16, #tpu.memory_space<vmem>>, vector<2x8xbf16>,
    %59 = vector.extract_strided_slice %46 {offsets = [0, 3, 0], sizes = [2, 1, 8], strides = [1, 1, 1]} : vector<2x8x8xf32> to vector<2x1x8xf32>
    %60 = vector.shape_cast %59 : vector<2x1x8xf32> to vector<2x8xf32>
    %61 = arith.truncf %60 : vector<2x8xf32> to vector<2x8xbf16>
    %c0_84 = arith.constant 0 : index
    %c24 = arith.constant 24 : index
    %62 = vector.load %arg16[%c0_84, %c24] : memref<2x64xbf16, #tpu.memory_space<vmem>>, vector<2x8xbf16>
    tpu.vector_store %arg16[%c0_84, %c24], %61 {strides = array<i32>} : memref<2x64xbf16, #tpu.memory_space<vmem>>, vector<2x8xbf16>,
    %63 = vector.extract_strided_slice %46 {offsets = [0, 4, 0], sizes = [2, 1, 8], strides = [1, 1, 1]} : vector<2x8x8xf32> to vector<2x1x8xf32>
    %64 = vector.shape_cast %63 : vector<2x1x8xf32> to vector<2x8xf32>
    %65 = arith.truncf %64 : vector<2x8xf32> to vector<2x8xbf16>
    %c0_85 = arith.constant 0 : index
    %c32 = arith.constant 32 : index
    %66 = vector.load %arg16[%c0_85, %c32] : memref<2x64xbf16, #tpu.memory_space<vmem>>, vector<2x8xbf16>
    tpu.vector_store %arg16[%c0_85, %c32], %65 {strides = array<i32>} : memref<2x64xbf16, #tpu.memory_space<vmem>>, vector<2x8xbf16>,
    %67 = vector.extract_strided_slice %46 {offsets = [0, 5, 0], sizes = [2, 1, 8], strides = [1, 1, 1]} : vector<2x8x8xf32> to vector<2x1x8xf32>
    %68 = vector.shape_cast %67 : vector<2x1x8xf32> to vector<2x8xf32>
    %69 = arith.truncf %68 : vector<2x8xf32> to vector<2x8xbf16>
    %c0_86 = arith.constant 0 : index
    %c40 = arith.constant 40 : index
    %70 = vector.load %arg16[%c0_86, %c40] : memref<2x64xbf16, #tpu.memory_space<vmem>>, vector<2x8xbf16>
    tpu.vector_store %arg16[%c0_86, %c40], %69 {strides = array<i32>} : memref<2x64xbf16, #tpu.memory_space<vmem>>, vector<2x8xbf16>,
    %71 = vector.extract_strided_slice %46 {offsets = [0, 6, 0], sizes = [2, 1, 8], strides = [1, 1, 1]} : vector<2x8x8xf32> to vector<2x1x8xf32>
    %72 = vector.shape_cast %71 : vector<2x1x8xf32> to vector<2x8xf32>
    %73 = arith.truncf %72 : vector<2x8xf32> to vector<2x8xbf16>
    %c0_87 = arith.constant 0 : index
    %c48 = arith.constant 48 : index
    %74 = vector.load %arg16[%c0_87, %c48] : memref<2x64xbf16, #tpu.memory_space<vmem>>, vector<2x8xbf16>
    tpu.vector_store %arg16[%c0_87, %c48], %73 {strides = array<i32>} : memref<2x64xbf16, #tpu.memory_space<vmem>>, vector<2x8xbf16>,
    %75 = vector.extract_strided_slice %46 {offsets = [0, 7, 0], sizes = [2, 1, 8], strides = [1, 1, 1]} : vector<2x8x8xf32> to vector<2x1x8xf32>
    %76 = vector.shape_cast %75 : vector<2x1x8xf32> to vector<2x8xf32>
    %77 = arith.truncf %76 : vector<2x8xf32> to vector<2x8xbf16>
    %c0_88 = arith.constant 0 : index
    %c56 = arith.constant 56 : index
    %78 = vector.load %arg16[%c0_88, %c56] : memref<2x64xbf16, #tpu.memory_space<vmem>>, vector<2x8xbf16>
    tpu.vector_store %arg16[%c0_88, %c56], %77 {strides = array<i32>} : memref<2x64xbf16, #tpu.memory_space<vmem>>, vector<2x8xbf16>,
    %c0_89 = arith.constant 0 : index
    %c0_90 = arith.constant 0 : index
    %79 = vector.load %arg16[%c0_89, %c0_90] : memref<2x64xbf16, #tpu.memory_space<vmem>>, vector<2x64xbf16>
    %c0_91 = arith.constant 0 : index
    %c0_92 = arith.constant 0 : index
    %80 = vector.load %arg6[%c0_91, %c0_92] : memref<64x32xbf16, #tpu.memory_space<vmem>>, vector<64x32xbf16>
    %cst_93 = arith.constant dense<0.000000e+00> : vector<2x32xf32>
    %81 = tpu.matmul %79, %80, %cst_93 {dimension_numbers = #tpu.dot_dimension_numbers<[1], [0], [0], [1], [0, 0, 1, 1], [], []>} : vector<2x64xbf16>, vector<64x32xbf16>, vector<2x32xf32> -> vector<2x32xf32>
    %c0_94 = arith.constant 0 : index
    %c0_95 = arith.constant 0 : index
    %82 = vector.load %arg7[%c0_94, %c0_95] : memref<1x32xf32, #tpu.memory_space<vmem>>, vector<1x32xf32>
    %83 = vector.broadcast %82 : vector<1x32xf32> to vector<2x32xf32>
    %84 = arith.addf %81, %83 : vector<2x32xf32>
    %cst_96 = arith.constant 0.000000e+00 : f32
    %85 = vector.broadcast %cst_96 : f32 to vector<2x32xf32>
    %86 = arith.maximumf %84, %85 : vector<2x32xf32>
    %87 = arith.truncf %86 : vector<2x32xf32> to vector<2x32xbf16>
    %c0_97 = arith.constant 0 : index
    %c0_98 = arith.constant 0 : index
    %88 = vector.load %arg8[%c0_97, %c0_98] : memref<32x128xbf16, #tpu.memory_space<vmem>>, vector<32x128xbf16>
    %cst_99 = arith.constant dense<0.000000e+00> : vector<2x128xf32>
    %89 = tpu.matmul %87, %88, %cst_99 {dimension_numbers = #tpu.dot_dimension_numbers<[1], [0], [0], [1], [0, 0, 1, 1], [], []>} : vector<2x32xbf16>, vector<32x128xbf16>, vector<2x128xf32> -> vector<2x128xf32>
    %c0_100 = arith.constant 0 : index
    %c0_101 = arith.constant 0 : index
    %90 = vector.load %arg9[%c0_100, %c0_101] : memref<1x128xf32, #tpu.memory_space<vmem>>, vector<1x128xf32>
    %91 = vector.broadcast %90 : vector<1x128xf32> to vector<2x128xf32>
    %92 = arith.addf %89, %91 : vector<2x128xf32>
    %c0_102 = arith.constant 0 : index
    %c0_103 = arith.constant 0 : index
    %93 = vector.load %arg10[%c0_102, %c0_103] : memref<2x128xf32, #tpu.memory_space<vmem>>, vector<2x128xf32>
    tpu.vector_store %arg10[%c0_102, %c0_103], %92 {strides = array<i32>} : memref<2x128xf32, #tpu.memory_space<vmem>>, vector<2x128xf32>,
    return
  }
  func.func @transform_0(%arg0: i32) -> (i32, i32, i32) {
    %c0_i32 = arith.constant 0 : i32
    %c0_i32_0 = arith.constant 0 : i32
    %c0_i32_1 = arith.constant 0 : i32
    return %arg0, %c0_i32, %c0_i32_0 : i32, i32, i32
  }
  func.func @transform_1(%arg0: i32) -> (i32, i32) {
    %c0_i32 = arith.constant 0 : i32
    %c0_i32_0 = arith.constant 0 : i32
    %c0_i32_1 = arith.constant 0 : i32
    return %c0_i32, %c0_i32_0 : i32, i32
  }
  func.func @transform_2(%arg0: i32) -> (i32, i32) {
    %c0_i32 = arith.constant 0 : i32
    %c0_i32_0 = arith.constant 0 : i32
    %c0_i32_1 = arith.constant 0 : i32
    return %c0_i32, %c0_i32_0 : i32, i32
  }
  func.func @transform_3(%arg0: i32) -> (i32, i32) {
    %c0_i32 = arith.constant 0 : i32
    %c0_i32_0 = arith.constant 0 : i32
    %c0_i32_1 = arith.constant 0 : i32
    return %c0_i32, %c0_i32_0 : i32, i32
  }
  func.func @transform_4(%arg0: i32) -> (i32, i32) {
    %c0_i32 = arith.constant 0 : i32
    %c0_i32_0 = arith.constant 0 : i32
    %c0_i32_1 = arith.constant 0 : i32
    return %c0_i32, %c0_i32_0 : i32, i32
  }
  func.func @transform_5(%arg0: i32) -> (i32, i32) {
    %c0_i32 = arith.constant 0 : i32
    %c0_i32_0 = arith.constant 0 : i32
    %c0_i32_1 = arith.constant 0 : i32
    return %c0_i32, %c0_i32_0 : i32, i32
  }
  func.func @transform_6(%arg0: i32) -> (i32, i32) {
    %c0_i32 = arith.constant 0 : i32
    %c0_i32_0 = arith.constant 0 : i32
    %c0_i32_1 = arith.constant 0 : i32
    return %c0_i32, %c0_i32_0 : i32, i32
  }
  func.func @transform_7(%arg0: i32) -> (i32, i32) {
    %c0_i32 = arith.constant 0 : i32
    %c0_i32_0 = arith.constant 0 : i32
    %c0_i32_1 = arith.constant 0 : i32
    return %c0_i32, %c0_i32_0 : i32, i32
  }
  func.func @transform_8(%arg0: i32) -> (i32, i32) {
    %c0_i32 = arith.constant 0 : i32
    %c0_i32_0 = arith.constant 0 : i32
    %c0_i32_1 = arith.constant 0 : i32
    return %c0_i32, %c0_i32_0 : i32, i32
  }
  func.func @transform_9(%arg0: i32) -> (i32, i32) {
    %c0_i32 = arith.constant 0 : i32
    %c0_i32_0 = arith.constant 0 : i32
    return %arg0, %c0_i32 : i32, i32
  }
}

</mosaic_0001>

<llo_original>
// kernel: forward.1
$region0: #{forward.1}
  #allocation0 [shape = 'u32[]', space=smem, size = 0x4, offset = 0x4, fixed_abs, tag = 'smem constant byte address 0x4 - core index']
  #allocation1 [shape = 'u32[72,128]{1,0:T(1,128)}', space=vmem, size = 0x9000, scoped, tag = 'internal scratch']
  #allocation2 [shape = 'bf16[2,18,4]{2,1,0:T(8,128)(2,1)}', space=vmem, size = 0x3000, scoped, tag = 'scratch operand']
  #allocation3 [shape = 'bf16[2,16,12]{2,1,0:T(8,128)(2,1)}', space=vmem, size = 0x2000, scoped, tag = 'scratch operand']
  #allocation4 [shape = 'bf16[2,18,8]{2,1,0:T(8,128)(2,1)}', space=vmem, size = 0x3000, scoped, tag = 'scratch operand']
  #allocation5 [shape = 'bf16[2,16,24]{2,1,0:T(8,128)(2,1)}', space=vmem, size = 0x2000, scoped, tag = 'scratch operand']
  #allocation6 [shape = 'f32[2,16,8]{2,1,0:T(8,128)}', space=vmem, size = 0x4000, scoped, tag = 'scratch operand']
  #allocation7 [shape = 'bf16[2,64]{1,0:T(2,128)(2,1)}', space=vmem, size = 0x200, scoped, tag = 'scratch operand']
  %s0 = inlined_call_operand.vmem [shape: f32[2,16,4], index: 0, kind: input, shape index: {}]
  %s1 = inlined_call_operand.vmem [shape: bf16[12,8], index: 1, kind: input, shape index: {}]
  %s2 = inlined_call_operand.vmem [shape: f32[1,8], index: 2, kind: input, shape index: {}]
  %s3 = inlined_call_operand.vmem [shape: bf16[24,8], index: 3, kind: input, shape index: {}]
  %s4 = inlined_call_operand.vmem [shape: f32[1,8], index: 4, kind: input, shape index: {}]
  %s5 = inlined_call_operand.vmem [shape: bf16[64,32], index: 5, kind: input, shape index: {}]
  %s6 = inlined_call_operand.vmem [shape: f32[1,32], index: 6, kind: input, shape index: {}]
  %s7 = inlined_call_operand.vmem [shape: bf16[32,128], index: 7, kind: input, shape index: {}]
  %s8 = inlined_call_operand.vmem [shape: f32[1,128], index: 8, kind: input, shape index: {}]
  %s9 = inlined_call_operand.hbm [shape: f32[2,128], index: 9, kind: output, shape index: {}]
  %s10 = sld [smem:[#allocation0]]
  $region46: #{forward.1} parent=0
    _
  %s12 = ssub.s32 1, %s10
  %s13 = scalar_select 0, %s12, %s10
  $region1: #{forward.1} parent=0
    #allocation8 [shape = 'u8[1024]{0}', space=vmem, size = 0x400, scoped, tag = 'output window, operand 0, single buffered']
    #allocation9 [shape = 's32[1]{0}', space=sflag, size = 0x4, scoped, tag = 'scoped memory for forward.1']
    %14 = vsyncpa [#allocation9], 0
    // Predicated region
    $region2: #{forward.1} parent=1 // pred_check
      _
    $region3: #{forward.1} parent=1 // pred_check_branch
      %16 = sbr.rel (0) target = $region5
    $region4: #{forward.1} parent=1 // pred_region
      _
    $region5: #{forward.1} parent=1 // pred_fallthru
      _
    // Predicated region
    $region6: #{forward.1} parent=1 // pred_check
      _
    $region7: #{forward.1} parent=1 // pred_check_branch
      %18 = sbr.rel (0) target = $region9
    $region8: #{forward.1} parent=1 // pred_region
      _
    $region9: #{forward.1} parent=1 // pred_fallthru
      _
    // Predicated region
    $region10: #{forward.1} parent=1 // pred_check
      _
    $region11: #{forward.1} parent=1 // pred_check_branch
      %20 = sbr.rel (0) target = $region13
    $region12: #{forward.1} parent=1 // pred_region
      _
    $region13: #{forward.1} parent=1 // pred_fallthru
      _
    // Predicated region
    $region14: #{forward.1} parent=1 // pred_check
      _
    $region15: #{forward.1} parent=1 // pred_check_branch
      %22 = sbr.rel (0) target = $region17
    $region16: #{forward.1} parent=1 // pred_region
      _
    $region17: #{forward.1} parent=1 // pred_fallthru
      _
    // Predicated region
    $region18: #{forward.1} parent=1 // pred_check
      _
    $region19: #{forward.1} parent=1 // pred_check_branch
      %24 = sbr.rel (0) target = $region21
    $region20: #{forward.1} parent=1 // pred_region
      _
    $region21: #{forward.1} parent=1 // pred_fallthru
      _
    // Predicated region
    $region22: #{forward.1} parent=1 // pred_check
      _
    $region23: #{forward.1} parent=1 // pred_check_branch
      %26 = sbr.rel (0) target = $region25
    $region24: #{forward.1} parent=1 // pred_region
      _
    $region25: #{forward.1} parent=1 // pred_fallthru
      _
    // Predicated region
    $region26: #{forward.1} parent=1 // pred_check
      _
    $region27: #{forward.1} parent=1 // pred_check_branch
      %28 = sbr.rel (0) target = $region29
    $region28: #{forward.1} parent=1 // pred_region
      _
    $region29: #{forward.1} parent=1 // pred_fallthru
      _
    // Predicated region
    $region30: #{forward.1} parent=1 // pred_check
      _
    $region31: #{forward.1} parent=1 // pred_check_branch
      %30 = sbr.rel (0) target = $region33
    $region32: #{forward.1} parent=1 // pred_region
      _
    $region33: #{forward.1} parent=1 // pred_fallthru
      _
    // Predicated region
    $region34: #{forward.1} parent=1 // pred_check
      _
    $region35: #{forward.1} parent=1 // pred_check_branch
      %32 = sbr.rel (0) target = $region37
    $region36: #{forward.1} parent=1 // pred_region
      _
    $region37: #{forward.1} parent=1 // pred_fallthru
      _
    %vm34 = vcmask 24576
    %vm35 = vsmask.f32 256
    %vm36 = vmand %vm34, %vm35
    %v37 = vld [vmem:[#allocation2] sm:$0x1]
    %v38 = vsel %vm36, 0, %v37
    %39 = vst [vmem:[#allocation2] sm:$0x1] %v38
    %v40 = vld [vmem:[#allocation2 + $0xc] sm:$0x1]
    %v41 = vsel %vm36, 0, %v40
    %42 = vst [vmem:[#allocation2 + $0xc] sm:$0x1] %v41
    %vm43 = vsmask.f32 7938
    %vm44 = vmand %vm34, %vm43
    %v45 = vld [vmem:[#allocation2 + $0x8] sm:$0x1]
    %v46 = vsel %vm44, 0, %v45
    %47 = vst [vmem:[#allocation2 + $0x8] sm:$0x1] %v46
    %v48 = vld [vmem:[#allocation2 + $0x14] sm:$0x1]
    %v49 = vsel %vm44, 0, %v48
    %50 = vst [vmem:[#allocation2 + $0x14] sm:$0x1] %v49
    %v51 = vld [vmem:[%s0] sm:$0xff]
    %v52 = vld [vmem:[%s0 + $0x8] sm:$0xff]
    %v53 = vld [vmem:[%s0 + $0x10] sm:$0xff]
    %v54 = vld [vmem:[%s0 + $0x18] sm:$0xff]
    %v55 = vpack.c.bf16 %v51, %v51
    %v56 = vpack.c.bf16 %v52, %v52
    %v57 = vpack.c.bf16 %v53, %v53
    %v58 = vpack.c.bf16 %v54, %v54
    %vm59 = vsmask.f32 4368
    %vm60 = vmor %vm35, %vm59
    %v62 = vshrl.u32 %v55, 16
    %v64 = vrot.slane %v62, 7
    %v65 = vshll.u32 %v55, 16
    %v67 = vor.u32 %v64, %v65
    %v68 = vrot.slane %v64, 4
    %v70 = vshrl.u32 %v56, 16
    %v72 = vrot.slane %v70, 7
    %v73 = vshll.u32 %v56, 16
    %v75 = vor.u32 %v72, %v73
    %v76 = vsel %vm60, %v68, %v75
    %v77 = vrot.slane %v72, 4
    %v79 = vshrl.u32 %v57, 16
    %v81 = vrot.slane %v79, 7
    %v82 = vshll.u32 %v57, 16
    %v84 = vor.u32 %v81, %v82
    %v85 = vrot.slane %v81, 4
    %v87 = vshrl.u32 %v58, 16
    %v89 = vrot.slane %v87, 7
    %v90 = vshll.u32 %v58, 16
    %v92 = vor.u32 %v89, %v90
    %v93 = vsel %vm60, %v85, %v92
    %v94 = vrot.slane %v89, 4
    %vm101 = vcmask 27648
    %vm102 = vmand %vm101, %vm43
    %v103 = vld [vmem:[#allocation2] sm:$0xf]
    %v104 = vsel %vm102, %v67, %v103
    %105 = vst [vmem:[#allocation2] sm:$0xf] %v104
    %vm106 = vcmask 27648
    %107 = vst.msk [vmem:[#allocation2 + $0x4] sm:$0xf] %vm106, %v76
    %v108 = vld [vmem:[#allocation2 + $0x8] sm:$0x1]
    %v109 = vsel %vm36, %v77, %v108
    %110 = vst [vmem:[#allocation2 + $0x8] sm:$0x1] %v109
    %v111 = vld [vmem:[#allocation2 + $0xc] sm:$0xf]
    %v112 = vsel %vm102, %v84, %v111
    %113 = vst [vmem:[#allocation2 + $0xc] sm:$0xf] %v112
    %114 = vst.msk [vmem:[#allocation2 + $0x10] sm:$0xf] %vm106, %v93
    %v115 = vld [vmem:[#allocation2 + $0x14] sm:$0x1]
    %v116 = vsel %vm36, %v94, %v115
    %117 = vst [vmem:[#allocation2 + $0x14] sm:$0x1] %v116
    %v118 = vld [vmem:[#allocation2] sm:$0xf]
    %v119 = vld [vmem:[#allocation2 + $0x4] sm:$0xf]
    %v120 = vld [vmem:[#allocation2 + $0xc] sm:$0xf]
    %v121 = vld [vmem:[#allocation2 + $0x10] sm:$0xf]
    %122 = vst.msk [vmem:[#allocation3] sm:$0xf] %vm106, %v118
    %123 = vst.msk [vmem:[#allocation3 + $0x4] sm:$0xf] %vm106, %v119
    %124 = vst.msk [vmem:[#allocation3 + $0x8] sm:$0xf] %vm106, %v120
    %125 = vst.msk [vmem:[#allocation3 + $0xc] sm:$0xf] %vm106, %v121
    %v126 = vld [vmem:[#allocation2] sm:$0xf]
    %v127 = vld [vmem:[#allocation2 + $0x4] sm:$0xf]
    %v128 = vld [vmem:[#allocation2 + $0x8] sm:$0x1]
    %v129 = vld [vmem:[#allocation2 + $0xc] sm:$0xf]
    %v130 = vld [vmem:[#allocation2 + $0x10] sm:$0xf]
    %v131 = vld [vmem:[#allocation2 + $0x14] sm:$0x1]
    %vm132 = vsmask.f32 3328
    %vm133 = vsmask.f32 7440
    %vm134 = vmor %vm132, %vm133
    %v136 = vshrl.u32 %v126, 16
    %v138 = vrot.slane %v136, 4
    %v139 = vshll.u32 %v126, 16
    %v141 = vrot.slane %v139, 5
    %v142 = vor.u32 %v138, %v141
    %v143 = vrot.slane %v142, 4
    %v145 = vshll.u32 %v127, 16
    %v147 = vrot.slane %v145, 5
    %v148 = vsel %vm134, %v143, %v147
    %v149 = vshrl.u32 %v127, 16
    %v151 = vrot.slane %v149, 4
    %v152 = vor.u32 %v151, %v147
    %v153 = vrot.slane %v152, 4
    %v155 = vshll.u32 %v128, 16
    %v157 = vrot.slane %v155, 5
    %v158 = vsel %vm134, %v153, %v157
    %v160 = vshrl.u32 %v129, 16
    %v162 = vrot.slane %v160, 4
    %v163 = vshll.u32 %v129, 16
    %v165 = vrot.slane %v163, 5
    %v166 = vor.u32 %v162, %v165
    %v167 = vrot.slane %v166, 4
    %v169 = vshll.u32 %v130, 16
    %v171 = vrot.slane %v169, 5
    %v172 = vsel %vm134, %v167, %v171
    %v173 = vshrl.u32 %v130, 16
    %v175 = vrot.slane %v173, 4
    %v176 = vor.u32 %v175, %v171
    %v177 = vrot.slane %v176, 4
    %v179 = vshll.u32 %v131, 16
    %v181 = vrot.slane %v179, 5
    %v182 = vsel %vm134, %v177, %v181
    %183 = vrot.lane.b32.xlu0 %v148, 4
    %v184 = vpop.permute.xlu0 %183
    %185 = vrot.lane.b32.xlu0 %v158, 4
    %v186 = vpop.permute.xlu0 %185
    %187 = vrot.lane.b32.xlu0 %v172, 4
    %v188 = vpop.permute.xlu0 %187
    %189 = vrot.lane.b32.xlu0 %v182, 4
    %v190 = vpop.permute.xlu0 %189
    %vm195 = vcmask 60448
    %196 = vst.msk [vmem:[#allocation3] sm:$0xf] %vm195, %v184
    %197 = vst.msk [vmem:[#allocation3 + $0x4] sm:$0xf] %vm195, %v186
    %198 = vst.msk [vmem:[#allocation3 + $0x8] sm:$0xf] %vm195, %v188
    %199 = vst.msk [vmem:[#allocation3 + $0xc] sm:$0xf] %vm195, %v190
    %v200 = vld [vmem:[#allocation2] sm:$0xe]
    %v201 = vld [vmem:[#allocation2 + $0x4] sm:$0xf]
    %v202 = vld [vmem:[#allocation2 + $0x8] sm:$0x1]
    %v203 = vld [vmem:[#allocation2 + $0xc] sm:$0xe]
    %v204 = vld [vmem:[#allocation2 + $0x10] sm:$0xf]
    %v205 = vld [vmem:[#allocation2 + $0x14] sm:$0x1]
    %vm212 = vcmask 1042432
    %vm213 = vcmask 1046532
    %vm214 = vmor %vm212, %vm213
    %v215 = vrot.slane %v200, 5
    %v216 = vrot.slane %v215, 4
    %v217 = vrot.slane %v201, 5
    %v218 = vsel %vm214, %v216, %v217
    %v219 = vrot.slane %v217, 4
    %v220 = vrot.slane %v202, 5
    %v221 = vsel %vm214, %v219, %v220
    %v222 = vrot.slane %v203, 5
    %v223 = vrot.slane %v222, 4
    %v224 = vrot.slane %v204, 5
    %v225 = vsel %vm214, %v223, %v224
    %v226 = vrot.slane %v224, 4
    %v227 = vrot.slane %v205, 5
    %v228 = vsel %vm214, %v226, %v227
    %229 = vrot.lane.b32.xlu0 %v218, 8
    %v230 = vpop.permute.xlu0 %229
    %231 = vrot.lane.b32.xlu0 %v221, 8
    %v232 = vpop.permute.xlu0 %231
    %233 = vrot.lane.b32.xlu0 %v225, 8
    %v234 = vpop.permute.xlu0 %233
    %235 = vrot.lane.b32.xlu0 %v228, 8
    %v236 = vpop.permute.xlu0 %235
    %vm241 = vcmask 93248
    %242 = vst.msk [vmem:[#allocation3] sm:$0xf] %vm241, %v230
    %243 = vst.msk [vmem:[#allocation3 + $0x4] sm:$0xf] %vm241, %v232
    %244 = vst.msk [vmem:[#allocation3 + $0x8] sm:$0xf] %vm241, %v234
    %245 = vst.msk [vmem:[#allocation3 + $0xc] sm:$0xf] %vm241, %v236
    %v246 = vld [vmem:[#allocation3] sm:$0xf]
    %v247 = vld [vmem:[#allocation3 + $0x4] sm:$0xf]
    %v248 = vld [vmem:[#allocation3 + $0x8] sm:$0xf]
    %v249 = vld [vmem:[#allocation3 + $0xc] sm:$0xf]
    %v250 = vld [vmem:[%s1] sm:$0xf]
    %v251 = vld [vmem:[%s1 + $0x4] sm:$0x3]
    %v252 = vld [vmem:[%s2] sm:$0x1]
    %v254 = vperm.slane %v252, 0
    %v260 = vunpack.c.l.b16 %v246
    %v261 = vunpack.c.l.b16 %v247
    %v262 = vunpack.c.l.b16 %v248
    %v263 = vunpack.c.l.b16 %v249
    %v264 = vpack.c.b16 %v261, %v260
    %v265 = vpack.c.b16 %v263, %v262
    %v268 = vunpack.c.l.b16 %v250
    %v269 = vunpack.c.l.b16 %v251
    %v270 = vpack.c.b16 %v269, %v268
    %vm271 = vcmask 97280
    %v273 = vsel %vm271, %v264, 0
    %v276 = vsel %vm271, %v265, 0
    %vm278 = vcmask 1045504
    %v280 = vsel %vm278, %v270, 0
    %282 = vmatpush.bf16.msra.mxu0 0
    %283 = vmatpush.bf16.msra.mxu0 0
    %284 = vmatpush.bf16.msra.mxu0 0
    %285 = vmatpush.bf16.msra.mxu0 0
    %286 = vmatpush.bf16.msra.mxu0 0
    %287 = vmatpush.bf16.msra.mxu0 0
    %288 = vmatpush.bf16.msra.mxu0 0
    %289 = vmatpush.bf16.msra.mxu0 %v280
    %290 = vmatmul.bf16.gmra.mxu0 %v273
    %v291 = vpop.f32.mrf.mxu0
    %v292 = vadd.f32 %v254, %v291
    %v293 = vpop.f32.mrf.mxu0
    %v294 = vadd.f32 %v254, %v293
    %295 = vmatmul.bf16.gmra.mxu0 %v276
    %v296 = vpop.f32.mrf.mxu0
    %v297 = vadd.f32 %v254, %v296
    %v298 = vpop.f32.mrf.mxu0
    %v299 = vadd.f32 %v254, %v298
    %300 = vdwg.mxu0
    %v301 = vmax.f32 %v292, 0.0
    %v302 = vmax.f32 %v294, 0.0
    %v303 = vmax.f32 %v297, 0.0
    %v304 = vmax.f32 %v299, 0.0
    %vm305 = vcmask 57344
    %vm306 = vmand %vm305, %vm35
    %v307 = vld [vmem:[#allocation4] sm:$0x1]
    %v308 = vsel %vm306, 0, %v307
    %309 = vst [vmem:[#allocation4] sm:$0x1] %v308
    %v310 = vld [vmem:[#allocation4 + $0xc] sm:$0x1]
    %v311 = vsel %vm306, 0, %v310
    %312 = vst [vmem:[#allocation4 + $0xc] sm:$0x1] %v311
    %vm313 = vmand %vm305, %vm43
    %v314 = vld [vmem:[#allocation4 + $0x8] sm:$0x1]
    %v315 = vsel %vm313, 0, %v314
    %316 = vst [vmem:[#allocation4 + $0x8] sm:$0x1] %v315
    %v317 = vld [vmem:[#allocation4 + $0x14] sm:$0x1]
    %v318 = vsel %vm313, 0, %v317
    %319 = vst [vmem:[#allocation4 + $0x14] sm:$0x1] %v318
    %v320 = vpack.c.bf16 %v301, %v301
    %v321 = vpack.c.bf16 %v302, %v302
    %v322 = vpack.c.bf16 %v303, %v303
    %v323 = vpack.c.bf16 %v304, %v304
    %v325 = vshrl.u32 %v320, 16
    %v327 = vrot.slane %v325, 7
    %v328 = vshll.u32 %v320, 16
    %v330 = vor.u32 %v327, %v328
    %v331 = vrot.slane %v327, 4
    %v333 = vshrl.u32 %v321, 16
    %v335 = vrot.slane %v333, 7
    %v336 = vshll.u32 %v321, 16
    %v338 = vor.u32 %v335, %v336
    %v339 = vsel %vm60, %v331, %v338
    %v340 = vrot.slane %v335, 4
    %v342 = vshrl.u32 %v322, 16
    %v344 = vrot.slane %v342, 7
    %v345 = vshll.u32 %v322, 16
    %v347 = vor.u32 %v344, %v345
    %v348 = vrot.slane %v344, 4
    %v350 = vshrl.u32 %v323, 16
    %v352 = vrot.slane %v350, 7
    %v353 = vshll.u32 %v323, 16
    %v355 = vor.u32 %v352, %v353
    %v356 = vsel %vm60, %v348, %v355
    %v357 = vrot.slane %v352, 4
    %vm364 = vcmask 60416
    %vm365 = vmand %vm364, %vm43
    %v366 = vld [vmem:[#allocation4] sm:$0xf]
    %v367 = vsel %vm365, %v330, %v366
    %368 = vst [vmem:[#allocation4] sm:$0xf] %v367
    %vm369 = vcmask 60416
    %370 = vst.msk [vmem:[#allocation4 + $0x4] sm:$0xf] %vm369, %v339
    %v371 = vld [vmem:[#allocation4 + $0x8] sm:$0x1]
    %v372 = vsel %vm306, %v340, %v371
    %373 = vst [vmem:[#allocation4 + $0x8] sm:$0x1] %v372
    %v374 = vld [vmem:[#allocation4 + $0xc] sm:$0xf]
    %v375 = vsel %vm365, %v347, %v374
    %376 = vst [vmem:[#allocation4 + $0xc] sm:$0xf] %v375
    %377 = vst.msk [vmem:[#allocation4 + $0x10] sm:$0xf] %vm369, %v356
    %v378 = vld [vmem:[#allocation4 + $0x14] sm:$0x1]
    %v379 = vsel %vm306, %v357, %v378
    %380 = vst [vmem:[#allocation4 + $0x14] sm:$0x1] %v379
    %v381 = vld [vmem:[#allocation4] sm:$0xf]
    %v382 = vld [vmem:[#allocation4 + $0x4] sm:$0xf]
    %v383 = vld [vmem:[#allocation4 + $0xc] sm:$0xf]
    %v384 = vld [vmem:[#allocation4 + $0x10] sm:$0xf]
    %385 = vst.msk [vmem:[#allocation5] sm:$0xf] %vm369, %v381
    %386 = vst.msk [vmem:[#allocation5 + $0x4] sm:$0xf] %vm369, %v382
    %387 = vst.msk [vmem:[#allocation5 + $0x8] sm:$0xf] %vm369, %v383
    %388 = vst.msk [vmem:[#allocation5 + $0xc] sm:$0xf] %vm369, %v384
    %v389 = vld [vmem:[#allocation4] sm:$0xf]
    %v390 = vld [vmem:[#allocation4 + $0x4] sm:$0xf]
    %v391 = vld [vmem:[#allocation4 + $0x8] sm:$0x1]
    %v392 = vld [vmem:[#allocation4 + $0xc] sm:$0xf]
    %v393 = vld [vmem:[#allocation4 + $0x10] sm:$0xf]
    %v394 = vld [vmem:[#allocation4 + $0x14] sm:$0x1]
    %v396 = vshrl.u32 %v389, 16
    %v398 = vrot.slane %v396, 4
    %v399 = vshll.u32 %v389, 16
    %v401 = vrot.slane %v399, 5
    %v402 = vor.u32 %v398, %v401
    %v403 = vrot.slane %v402, 4
    %v405 = vshll.u32 %v390, 16
    %v407 = vrot.slane %v405, 5
    %v408 = vsel %vm134, %v403, %v407
    %v409 = vshrl.u32 %v390, 16
    %v411 = vrot.slane %v409, 4
    %v412 = vor.u32 %v411, %v407
    %v413 = vrot.slane %v412, 4
    %v415 = vshll.u32 %v391, 16
    %v417 = vrot.slane %v415, 5
    %v418 = vsel %vm134, %v413, %v417
    %v420 = vshrl.u32 %v392, 16
    %v422 = vrot.slane %v420, 4
    %v423 = vshll.u32 %v392, 16
    %v425 = vrot.slane %v423, 5
    %v426 = vor.u32 %v422, %v425
    %v427 = vrot.slane %v426, 4
    %v429 = vshll.u32 %v393, 16
    %v431 = vrot.slane %v429, 5
    %v432 = vsel %vm134, %v427, %v431
    %v433 = vshrl.u32 %v393, 16
    %v435 = vrot.slane %v433, 4
    %v436 = vor.u32 %v435, %v431
    %v437 = vrot.slane %v436, 4
    %v439 = vshll.u32 %v394, 16
    %v441 = vrot.slane %v439, 5
    %v442 = vsel %vm134, %v437, %v441
    %443 = vrot.lane.b32.xlu0 %v408, 8
    %v444 = vpop.permute.xlu0 %443
    %445 = vrot.lane.b32.xlu0 %v418, 8
    %v446 = vpop.permute.xlu0 %445
    %447 = vrot.lane.b32.xlu0 %v432, 8
    %v448 = vpop.permute.xlu0 %447
    %449 = vrot.lane.b32.xlu0 %v442, 8
    %v450 = vpop.permute.xlu0 %449
    %vm455 = vcmask 126016
    %456 = vst.msk [vmem:[#allocation5] sm:$0xf] %vm455, %v444
    %457 = vst.msk [vmem:[#allocation5 + $0x4] sm:$0xf] %vm455, %v446
    %458 = vst.msk [vmem:[#allocation5 + $0x8] sm:$0xf] %vm455, %v448
    %459 = vst.msk [vmem:[#allocation5 + $0xc] sm:$0xf] %vm455, %v450
    %v460 = vld [vmem:[#allocation4] sm:$0xe]
    %v461 = vld [vmem:[#allocation4 + $0x4] sm:$0xf]
    %v462 = vld [vmem:[#allocation4 + $0x8] sm:$0x1]
    %v463 = vld [vmem:[#allocation4 + $0xc] sm:$0xe]
    %v464 = vld [vmem:[#allocation4 + $0x10] sm:$0xf]
    %v465 = vld [vmem:[#allocation4 + $0x14] sm:$0x1]
    %v472 = vrot.slane %v460, 5
    %v473 = vrot.slane %v472, 4
    %v474 = vrot.slane %v461, 5
    %v475 = vsel %vm214, %v473, %v474
    %v476 = vrot.slane %v474, 4
    %v477 = vrot.slane %v462, 5
    %v478 = vsel %vm214, %v476, %v477
    %v479 = vrot.slane %v463, 5
    %v480 = vrot.slane %v479, 4
    %v481 = vrot.slane %v464, 5
    %v482 = vsel %vm214, %v480, %v481
    %v483 = vrot.slane %v481, 4
    %v484 = vrot.slane %v465, 5
    %v485 = vsel %vm214, %v483, %v484
    %486 = vrot.lane.b32.xlu0 %v475, 16
    %v487 = vpop.permute.xlu0 %486
    %488 = vrot.lane.b32.xlu0 %v478, 16
    %v489 = vpop.permute.xlu0 %488
    %490 = vrot.lane.b32.xlu0 %v482, 16
    %v491 = vpop.permute.xlu0 %490
    %492 = vrot.lane.b32.xlu0 %v485, 16
    %v493 = vpop.permute.xlu0 %492
    %vm498 = vcmask 191616
    %499 = vst.msk [vmem:[#allocation5] sm:$0xf] %vm498, %v487
    %500 = vst.msk [vmem:[#allocation5 + $0x4] sm:$0xf] %vm498, %v489
    %501 = vst.msk [vmem:[#allocation5 + $0x8] sm:$0xf] %vm498, %v491
    %502 = vst.msk [vmem:[#allocation5 + $0xc] sm:$0xf] %vm498, %v493
    %v503 = vld [vmem:[#allocation5] sm:$0xf]
    %v504 = vld [vmem:[#allocation5 + $0x4] sm:$0xf]
    %v505 = vld [vmem:[#allocation5 + $0x8] sm:$0xf]
    %v506 = vld [vmem:[#allocation5 + $0xc] sm:$0xf]
    %v507 = vld [vmem:[%s3] sm:$0xf]
    %v508 = vld [vmem:[%s3 + $0x4] sm:$0xf]
    %v509 = vld [vmem:[%s3 + $0x8] sm:$0xf]
    %v510 = vld [vmem:[%s4] sm:$0x1]
    %v512 = vperm.slane %v510, 0
    %v518 = vunpack.c.l.b16 %v503
    %v519 = vunpack.c.l.b16 %v504
    %v520 = vunpack.c.l.b16 %v505
    %v521 = vunpack.c.l.b16 %v506
    %v522 = vpack.c.b16 %v519, %v518
    %v523 = vpack.c.b16 %v521, %v520
    %v527 = vunpack.c.l.b16 %v507
    %v528 = vunpack.c.l.b16 %v508
    %v529 = vunpack.c.l.b16 %v509
    %v530 = vpack.c.b16 %v528, %v527
    %v531 = vpack.c.b16 %v529, %v529
    %vm533 = vcmask 195584
    %v535 = vsel %vm533, %v522, 0
    %v538 = vsel %vm533, %v523, 0
    %vm540 = vcmask 1043456
    %v542 = vsel %vm540, %v531, 0
    %544 = vmatpush.bf16.msra.mxu0 0
    %545 = vmatpush.bf16.msra.mxu0 0
    %546 = vmatpush.bf16.msra.mxu0 0
    %547 = vmatpush.bf16.msra.mxu0 0
    %548 = vmatpush.bf16.msra.mxu0 0
    %549 = vmatpush.bf16.msra.mxu0 0
    %550 = vmatpush.bf16.msra.mxu0 %v542
    %551 = vmatpush.bf16.msra.mxu0 %v530
    %552 = vmatmul.bf16.gmra.mxu0 %v535
    %v553 = vpop.f32.mrf.mxu0
    %v554 = vadd.f32 %v512, %v553
    %v555 = vpop.f32.mrf.mxu0
    %v556 = vadd.f32 %v512, %v555
    %557 = vmatmul.bf16.gmra.mxu0 %v538
    %v558 = vpop.f32.mrf.mxu0
    %v559 = vadd.f32 %v512, %v558
    %v560 = vpop.f32.mrf.mxu0
    %v561 = vadd.f32 %v512, %v560
    %562 = vdwg.mxu0
    %v563 = vmax.f32 %v554, 0.0
    %v564 = vmax.f32 %v556, 0.0
    %v565 = vmax.f32 %v559, 0.0
    %v566 = vmax.f32 %v561, 0.0
    %vm567 = vcmask 64512
    %568 = vst.msk [vmem:[#allocation6] sm:$0xff] %vm567, %v563
    %569 = vst.msk [vmem:[#allocation6 + $0x8] sm:$0xff] %vm567, %v564
    %570 = vst.msk [vmem:[#allocation6 + $0x10] sm:$0xff] %vm567, %v565
    %571 = vst.msk [vmem:[#allocation6 + $0x18] sm:$0xff] %vm567, %v566
    %v572 = vld [vmem:[#allocation6] ss:$2 sm:$0xff]
    %s573 = scalar_lea.vmem [#allocation6], 16
    %v574 = vld [vmem:[%s573] ss:$2 sm:$0xff]
    %s575 = scalar_lea.vmem [#allocation6], 1
    %v576 = vld [vmem:[%s575] ss:$2 sm:$0xff]
    %s577 = scalar_lea.vmem [#allocation6], 17
    %v578 = vld [vmem:[%s577] ss:$2 sm:$0xff]
    %v579 = vmax.f32 %v572, %v576
    %v580 = vmax.f32 %v574, %v578
    %v581 = vpack.c.bf16 %v579, %v579
    %v582 = vpack.c.bf16 %v580, %v580
    %v585 = vrot.slane %v581, 3
    %v586 = vrot.slane %v582, 3
    %vm587 = vcmask 1040384
    %v590 = vsel %vm587, %v581, %v585
    %v593 = vsel %vm587, %v582, %v586
    %594 = vst [vmem:[#allocation1] ss:$4 sm:$0xff] %v590
    %v595 = vld [vmem:[#allocation1] sm:$0xff]
    %s597 = scalar_lea.vmem [#allocation1], 32
    %598 = vst [vmem:[%s597] ss:$4 sm:$0xff] %v593
    %v599 = vld [vmem:[#allocation1 + $0x20] sm:$0xff]
    %v601 = vunpack.c.l.b16 %v595
    %v602 = vunpack.c.l.b16 %v599
    %v603 = vrot.slane %v602, 7
    %vm604 = vcmask 1041409
    %v605 = vsel %vm604, %v603, %v601
    %v606 = vpack.c.b16 %v605, %v605
    %v607 = vrot.slane %v606, 3
    %v610 = vsel %vm587, %v606, %v607
    %vm612 = vcmask 57344
    %613 = vst.msk [vmem:[#allocation7] sm:$0x1] %vm612, %v610
    %614 = vst [vmem:[#allocation1] ss:$4 sm:$0xff] %v590
    %v615 = vld [vmem:[#allocation1] sm:$0xff]
    %s617 = scalar_lea.vmem [#allocation1], 32
    %618 = vst [vmem:[%s617] ss:$4 sm:$0xff] %v593
    %v619 = vld [vmem:[#allocation1 + $0x20] sm:$0xff]
    %v621 = vunpack.c.l.b16 %v615
    %v622 = vunpack.c.l.b16 %v619
    %v623 = vrot.slane %v621, 1
    %v624 = vsel %vm604, %v622, %v623
    %v625 = vpack.c.b16 %v624, %v624
    %v626 = vrot.slane %v625, 3
    %v629 = vsel %vm587, %v625, %v626
    %631 = vrot.lane.b32.xlu0 %v629, 8
    %v632 = vpop.permute.xlu0 %631
    %vm634 = vcmask 122944
    %635 = vst.msk [vmem:[#allocation7] sm:$0x1] %vm634, %v632
    %636 = vst [vmem:[#allocation1] sm:$0xff] %v581
    %s637 = scalar_lea.vmem [#allocation1], 1
    %v638 = vld [vmem:[%s637] ss:$4 sm:$0xff]
    %639 = vst [vmem:[#allocation1 + $0x20] sm:$0xff] %v582
    %s640 = scalar_lea.vmem [#allocation1], 33
    %v641 = vld [vmem:[%s640] ss:$4 sm:$0xff]
    %642 = vst [vmem:[#allocation1] ss:$4 sm:$0xff] %v638
    %v643 = vld [vmem:[#allocation1] sm:$0xff]
    %s645 = scalar_lea.vmem [#allocation1], 32
    %646 = vst [vmem:[%s645] ss:$4 sm:$0xff] %v641
    %v647 = vld [vmem:[#allocation1 + $0x20] sm:$0xff]
    %v649 = vunpack.c.l.b16 %v643
    %v650 = vunpack.c.l.b16 %v647
    %v651 = vrot.slane %v650, 7
    %v652 = vsel %vm604, %v651, %v649
    %v653 = vpack.c.b16 %v652, %v652
    %v654 = vrot.slane %v653, 3
    %v657 = vsel %vm587, %v653, %v654
    %659 = vrot.lane.b32.xlu0 %v657, 16
    %v660 = vpop.permute.xlu0 %659
    %vm662 = vcmask 188544
    %663 = vst.msk [vmem:[#allocation7] sm:$0x1] %vm662, %v660
    %664 = vst [vmem:[#allocation1] sm:$0xff] %v581
    %s665 = scalar_lea.vmem [#allocation1], 1
    %v666 = vld [vmem:[%s665] ss:$4 sm:$0xff]
    %667 = vst [vmem:[#allocation1 + $0x20] sm:$0xff] %v582
    %s668 = scalar_lea.vmem [#allocation1], 33
    %v669 = vld [vmem:[%s668] ss:$4 sm:$0xff]
    %670 = vst [vmem:[#allocation1] ss:$4 sm:$0xff] %v666
    %v671 = vld [vmem:[#allocation1] sm:$0xff]
    %s673 = scalar_lea.vmem [#allocation1], 32
    %674 = vst [vmem:[%s673] ss:$4 sm:$0xff] %v669
    %v675 = vld [vmem:[#allocation1 + $0x20] sm:$0xff]
    %v677 = vunpack.c.l.b16 %v671
    %v678 = vunpack.c.l.b16 %v675
    %v679 = vrot.slane %v677, 1
    %v680 = vsel %vm604, %v678, %v679
    %v681 = vpack.c.b16 %v680, %v680
    %v682 = vrot.slane %v681, 3
    %v685 = vsel %vm587, %v681, %v682
    %687 = vrot.lane.b32.xlu0 %v685, 24
    %v688 = vpop.permute.xlu0 %687
    %vm690 = vcmask 254144
    %691 = vst.msk [vmem:[#allocation7] sm:$0x1] %vm690, %v688
    %692 = vst [vmem:[#allocation1] sm:$0xff] %v581
    %s693 = scalar_lea.vmem [#allocation1], 2
    %v694 = vld [vmem:[%s693] ss:$4 sm:$0xff]
    %695 = vst [vmem:[#allocation1 + $0x20] sm:$0xff] %v582
    %s696 = scalar_lea.vmem [#allocation1], 34
    %v697 = vld [vmem:[%s696] ss:$4 sm:$0xff]
    %698 = vst [vmem:[#allocation1] ss:$4 sm:$0xff] %v694
    %v699 = vld [vmem:[#allocation1] sm:$0xff]
    %s701 = scalar_lea.vmem [#allocation1], 32
    %702 = vst [vmem:[%s701] ss:$4 sm:$0xff] %v697
    %v703 = vld [vmem:[#allocation1 + $0x20] sm:$0xff]
    %v705 = vunpack.c.l.b16 %v699
    %v706 = vunpack.c.l.b16 %v703
    %v707 = vrot.slane %v706, 7
    %v708 = vsel %vm604, %v707, %v705
    %v709 = vpack.c.b16 %v708, %v708
    %v710 = vrot.slane %v709, 3
    %v713 = vsel %vm587, %v709, %v710
    %715 = vrot.lane.b32.xlu0 %v713, 32
    %v716 = vpop.permute.xlu0 %715
    %vm718 = vcmask 319744
    %719 = vst.msk [vmem:[#allocation7] sm:$0x1] %vm718, %v716
    %720 = vst [vmem:[#allocation1] sm:$0xff] %v581
    %s721 = scalar_lea.vmem [#allocation1], 2
    %v722 = vld [vmem:[%s721] ss:$4 sm:$0xff]
    %723 = vst [vmem:[#allocation1 + $0x20] sm:$0xff] %v582
    %s724 = scalar_lea.vmem [#allocation1], 34
    %v725 = vld [vmem:[%s724] ss:$4 sm:$0xff]
    %726 = vst [vmem:[#allocation1] ss:$4 sm:$0xff] %v722
    %v727 = vld [vmem:[#allocation1] sm:$0xff]
    %s729 = scalar_lea.vmem [#allocation1], 32
    %730 = vst [vmem:[%s729] ss:$4 sm:$0xff] %v725
    %v731 = vld [vmem:[#allocation1 + $0x20] sm:$0xff]
    %v733 = vunpack.c.l.b16 %v727
    %v734 = vunpack.c.l.b16 %v731
    %v735 = vrot.slane %v733, 1
    %v736 = vsel %vm604, %v734, %v735
    %v737 = vpack.c.b16 %v736, %v736
    %v738 = vrot.slane %v737, 3
    %v741 = vsel %vm587, %v737, %v738
    %743 = vrot.lane.b32.xlu0 %v741, 40
    %v744 = vpop.permute.xlu0 %743
    %vm746 = vcmask 385344
    %747 = vst.msk [vmem:[#allocation7] sm:$0x1] %vm746, %v744
    %748 = vst [vmem:[#allocation1] sm:$0xff] %v581
    %s749 = scalar_lea.vmem [#allocation1], 3
    %v750 = vld [vmem:[%s749] ss:$4 sm:$0xff]
    %751 = vst [vmem:[#allocation1 + $0x20] sm:$0xff] %v582
    %s752 = scalar_lea.vmem [#allocation1], 35
    %v753 = vld [vmem:[%s752] ss:$4 sm:$0xff]
    %754 = vst [vmem:[#allocation1] ss:$4 sm:$0xff] %v750
    %v755 = vld [vmem:[#allocation1] sm:$0xff]
    %s757 = scalar_lea.vmem [#allocation1], 32
    %758 = vst [vmem:[%s757] ss:$4 sm:$0xff] %v753
    %v759 = vld [vmem:[#allocation1 + $0x20] sm:$0xff]
    %v761 = vunpack.c.l.b16 %v755
    %v762 = vunpack.c.l.b16 %v759
    %v763 = vrot.slane %v762, 7
    %v764 = vsel %vm604, %v763, %v761
    %v765 = vpack.c.b16 %v764, %v764
    %v766 = vrot.slane %v765, 3
    %v769 = vsel %vm587, %v765, %v766
    %771 = vrot.lane.b32.xlu0 %v769, 48
    %v772 = vpop.permute.xlu0 %771
    %vm774 = vcmask 450944
    %775 = vst.msk [vmem:[#allocation7] sm:$0x1] %vm774, %v772
    %776 = vst [vmem:[#allocation1] sm:$0xff] %v581
    %s777 = scalar_lea.vmem [#allocation1], 3
    %v778 = vld [vmem:[%s777] ss:$4 sm:$0xff]
    %779 = vst [vmem:[#allocation1 + $0x20] sm:$0xff] %v582
    %s780 = scalar_lea.vmem [#allocation1], 35
    %v781 = vld [vmem:[%s780] ss:$4 sm:$0xff]
    %782 = vst [vmem:[#allocation1] ss:$4 sm:$0xff] %v778
    %v783 = vld [vmem:[#allocation1] sm:$0xff]
    %s785 = scalar_lea.vmem [#allocation1], 32
    %786 = vst [vmem:[%s785] ss:$4 sm:$0xff] %v781
    %v787 = vld [vmem:[#allocation1 + $0x20] sm:$0xff]
    %v789 = vunpack.c.l.b16 %v783
    %v790 = vunpack.c.l.b16 %v787
    %v791 = vrot.slane %v789, 1
    %v792 = vsel %vm604, %v790, %v791
    %v793 = vpack.c.b16 %v792, %v792
    %v794 = vrot.slane %v793, 3
    %v797 = vsel %vm587, %v793, %v794
    %799 = vrot.lane.b32.xlu0 %v797, 56
    %v800 = vpop.permute.xlu0 %799
    %vm802 = vcmask 516544
    %803 = vst.msk [vmem:[#allocation7] sm:$0x1] %vm802, %v800
    %v804 = vld [vmem:[#allocation7] sm:$0x1]
    %v805 = vld [vmem:[%s5] sm:$0xf]
    %v806 = vld [vmem:[%s5 + $0x4] sm:$0xf]
    %v807 = vld [vmem:[%s5 + $0x8] sm:$0xf]
    %v808 = vld [vmem:[%s5 + $0xc] sm:$0xf]
    %v809 = vld [vmem:[%s5 + $0x10] sm:$0xf]
    %v810 = vld [vmem:[%s5 + $0x14] sm:$0xf]
    %v811 = vld [vmem:[%s5 + $0x18] sm:$0xf]
    %v812 = vld [vmem:[%s5 + $0x1c] sm:$0xf]
    %v813 = vld [vmem:[%s6] sm:$0x1]
    %v815 = vperm.slane %v813, 0
    %v825 = vunpack.c.l.b16 %v805
    %v826 = vunpack.c.l.b16 %v806
    %v827 = vunpack.c.l.b16 %v807
    %v828 = vunpack.c.l.b16 %v808
    %v829 = vunpack.c.l.b16 %v809
    %v830 = vunpack.c.l.b16 %v810
    %v831 = vunpack.c.l.b16 %v811
    %v832 = vunpack.c.l.b16 %v812
    %v833 = vpack.c.b16 %v826, %v825
    %v834 = vpack.c.b16 %v828, %v827
    %v835 = vpack.c.b16 %v830, %v829
    %v836 = vpack.c.b16 %v832, %v831
    %vm841 = vcmask 523264
    %v843 = vsel %vm841, %v804, 0
    %845 = vmatpush.bf16.msra.mxu0 0
    %846 = vmatpush.bf16.msra.mxu0 0
    %847 = vmatpush.bf16.msra.mxu0 0
    %848 = vmatpush.bf16.msra.mxu0 0
    %849 = vmatpush.bf16.msra.mxu0 %v836
    %850 = vmatpush.bf16.msra.mxu0 %v835
    %851 = vmatpush.bf16.msra.mxu0 %v834
    %852 = vmatpush.bf16.msra.mxu0 %v833
    %853 = vmatmul.bf16.gmra.mxu0 %v843
    %v854 = vpop.f32.mrf.mxu0
    %v855 = vadd.f32 %v815, %v854
    %v856 = vpop.f32.mrf.mxu0
    %857 = vdwg.mxu0
    %v858 = vmax.f32 %v855, 0.0
    %v859 = vpack.c.bf16 %v858, %v858
    %v860 = vld [vmem:[%s7] sm:$0xf]
    %v861 = vld [vmem:[%s7 + $0x4] sm:$0xf]
    %v862 = vld [vmem:[%s7 + $0x8] sm:$0xf]
    %v863 = vld [vmem:[%s7 + $0xc] sm:$0xf]
    %v864 = vld [vmem:[%s8] sm:$0x1]
    %v866 = vperm.slane %v864, 0
    %v872 = vunpack.c.l.b16 %v860
    %v873 = vunpack.c.l.b16 %v861
    %v874 = vunpack.c.l.b16 %v862
    %v875 = vunpack.c.l.b16 %v863
    %v876 = vpack.c.b16 %v873, %v872
    %v877 = vpack.c.b16 %v875, %v874
    %vm880 = vcmask 261120
    %v882 = vsel %vm880, %v859, 0
    %884 = vmatpush.bf16.msra.mxu0 0
    %885 = vmatpush.bf16.msra.mxu0 0
    %886 = vmatpush.bf16.msra.mxu0 0
    %887 = vmatpush.bf16.msra.mxu0 0
    %888 = vmatpush.bf16.msra.mxu0 0
    %889 = vmatpush.bf16.msra.mxu0 0
    %890 = vmatpush.bf16.msra.mxu0 %v877
    %891 = vmatpush.bf16.msra.mxu0 %v876
    %892 = vmatmul.bf16.gmra.mxu0 %v882
    %v893 = vpop.f32.mrf.mxu0
    %v894 = vadd.f32 %v866, %v893
    %v895 = vpop.f32.mrf.mxu0
    %896 = vdwg.mxu0
    %897 = vst [vmem:[#allocation8] sm:$0x3] %v894
    // Predicated region
    $region38: #{forward.1} parent=1 // pred_check
      _
    $region39: #{forward.1} parent=1 // pred_check_branch
      %899 = sbr.rel (0) target = $region41
    $region40: #{forward.1} parent=1 // pred_region
      %901 = vsyncadd [#allocation9], 0
      %s903 = sshll.u32 [#allocation8], 4
      %s904 = int_to_ptr.vmem [resolvable:$true] %s903
      %s905 = sshll.u32 %s9, 4
      %s906 = int_to_ptr.hbm [resolvable:$true] %s905
      %908 = dma.vmem_to_hbm [thread:$0]  %s904, 32, %s906, [#allocation9]
    $region41: #{forward.1} parent=1 // pred_fallthru
      _
    // Predicated region
    $region42: #{forward.1} parent=1 // pred_check
      _
    $region43: #{forward.1} parent=1 // pred_check_branch
      %910 = sbr.rel (0) target = $region45
    $region44: #{forward.1} parent=1 // pred_region
      %912 = dma.done [#allocation9], 32
    $region45: #{forward.1} parent=1 // pred_fallthru
      _
    %913 = vsyncpa [#allocation9], 1

</llo_original>
